<compile_context>
chip_gen: v7x
topology: tpu7x:2x2x1
jax: 0.10.0
libtpu: 0.0.40
codegen_flags: <defaults>
</compile_context>

<pallas_src>
import functools

import jax
import jax.numpy as jnp
from jax.experimental import pallas as pl
from jax.experimental.pallas import tpu as pltpu

D_NUM = 10
D_EMB = 32
D_IN = D_NUM + 2 * D_EMB     # 74
D_IN_PAD = 128               # lane-dense / MXU-aligned K for the first matmul
D_H1 = 256
D_H2 = 128
D_OUT = 384
LN_EPS = 1e-5
NORM_EPS = 1e-12             # F.normalize default eps


def _round_up(n, m):
    return ((n + m - 1) // m) * m


def _choose_tile(b, bt_max):
    """Multiple-of-8 batch tile.

    Keeps >= 2 grid steps whenever the batch allows it (v7x has 2 TensorCores and the
    1-D grid is "parallel"), caps the tile at bt_max to bound VMEM, and keeps
    round_up(b, tile) - b to at most ~8 rows per grid step of padding.
    """
    b8 = _round_up(b, 8)
    if b8 <= 8:
        return 8
    steps = max(2, -(-b8 // bt_max))              # ceil(b8 / bt_max), but >= 2
    return _round_up(-(-b8 // steps), 8)          # round_up(ceil(b8 / steps), 8)


def _erf_f32(x, approx_recip=False):
    """f32 erf via XLA's rational approximation (pure VPU ops; ~ULP accurate).

    With approx_recip=True the final 1/q goes to the EUP (pl.reciprocal) instead of a
    multi-cycle VALU divide -- kernel-only path (q stays positive and O(1) here).
    """
    k_alpha = (0.00022905065861350646, 0.0034082910107109506, 0.050955695062380861,
               0.18520832239976145, 1.128379143519084)
    k_beta = (-1.1791602954361697e-7, 0.000023547966471313185, 0.0010179625278914885,
              0.014070470171167667, 0.11098505178285362, 0.49746925110067538, 1.0)
    c = jnp.float32(3.832506856900711)  # erfinv(1 - 2^-23)
    xc = jnp.clip(x, -c, c)
    x2 = xc * xc
    p = jnp.float32(k_alpha[0])
    for a in k_alpha[1:]:
        p = p * x2 + jnp.float32(a)
    q = jnp.float32(k_beta[0])
    for b in k_beta[1:]:
        q = q * x2 + jnp.float32(b)
    if approx_recip:
        return xc * p * pl.reciprocal(q, approx=True)
    return xc * p / q


def _gelu_exact(x, approx_recip=False):
    # nn.GELU() default (approximate='none'): 0.5 * x * (1 + erf(x / sqrt(2)))
    return 0.5 * x * (1.0 + _erf_f32(x * jnp.float32(0.7071067811865476), approx_recip))


def _layernorm(x, gamma, beta):
    """One-pass LayerNorm: independent sum / sum-of-squares reductions (f32)."""
    d = x.shape[-1]
    inv_d = jnp.float32(1.0 / d)
    s1 = jnp.sum(x, axis=-1, keepdims=True)
    s2 = jnp.sum(x * x, axis=-1, keepdims=True)
    mu = s1 * inv_d
    var = jnp.maximum(s2 * inv_d - mu * mu, 0.0)
    inv = jax.lax.rsqrt(var + jnp.float32(LN_EPS))
    return (x - mu) * inv * gamma + beta


def student_tower_kernel(x_ref,
                         w1_ref, b1_ref, g1_ref, bt1_ref,
                         w2_ref, b2_ref, g2_ref, bt2_ref,
                         w3_ref, b3_ref,
                         o_ref,
                         xpad_ref):
    rows = x_ref.shape[0]
    # Zero-extend the 74 input features to a lane-dense 128 inside VMEM (w1 rows
    # 74..127 are zero, so this is numerically exact).  Pad lanes are re-zeroed every
    # step: with dimension_semantics=("parallel",) a megacore TensorCore may never run
    # grid step 0, so a one-shot pl.when(i == 0) init would be unsafe.
    xpad_ref[:, D_IN:] = jnp.zeros((rows, D_IN_PAD - D_IN), jnp.float32)
    xpad_ref[:, :D_IN] = x_ref[...]
    xb = xpad_ref[...].astype(jnp.bfloat16)

    # Linear(128 -> 256) + LayerNorm + GELU   (Dropout == identity in eval)
    h = jnp.dot(xb, w1_ref[...], preferred_element_type=jnp.float32) + b1_ref[...]
    h = _gelu_exact(_layernorm(h, g1_ref[...], bt1_ref[...]), approx_recip=True)
    # Linear(256 -> 128) + LayerNorm + GELU
    h = jnp.dot(h.astype(jnp.bfloat16), w2_ref[...],
                preferred_element_type=jnp.float32) + b2_ref[...]
    h = _gelu_exact(_layernorm(h, g2_ref[...], bt2_ref[...]), approx_recip=True)
    # Linear(128 -> 384)
    h = jnp.dot(h.astype(jnp.bfloat16), w3_ref[...],
                preferred_element_type=jnp.float32) + b3_ref[...]
    # F.normalize(dim=-1): x / max(||x||_2, eps) == x * rsqrt(max(sum(x^2), eps^2))
    sumsq = jnp.sum(h * h, axis=-1, keepdims=True)
    inv = jax.lax.rsqrt(jnp.maximum(sumsq, jnp.float32(NORM_EPS * NORM_EPS)))
    o_ref[...] = h * inv


def init_params(key, n_code, n_prof):
    ks = jax.random.split(key, 8)

    def linear(kw, kb, fan_in, fan_out):
        bound = 1.0 / (fan_in ** 0.5)
        w = jax.random.uniform(kw, (fan_in, fan_out), jnp.float32, -bound, bound)
        b = jax.random.uniform(kb, (1, fan_out), jnp.float32, -bound, bound)
        return w, b

    w1, b1 = linear(ks[0], ks[1], D_IN, D_H1)
    w2, b2 = linear(ks[2], ks[3], D_H1, D_H2)
    w3, b3 = linear(ks[4], ks[5], D_H2, D_OUT)
    # Kernel-ready weights: bf16 MXU operands; w1 rows zero-padded 74 -> 128 once here
    # (hoisted out of the jitted forward).  Biases and LN affine params stay f32.
    w1 = jnp.pad(w1, ((0, D_IN_PAD - D_IN), (0, 0))).astype(jnp.bfloat16)
    return dict(
        emb_code=jax.random.normal(ks[6], (n_code, D_EMB), jnp.float32),
        emb_prof=jax.random.normal(ks[7], (n_prof, D_EMB), jnp.float32),
        w1=w1, b1=b1,
        g1=jnp.ones((1, D_H1), jnp.float32), beta1=jnp.zeros((1, D_H1), jnp.float32),
        w2=w2.astype(jnp.bfloat16), b2=b2,
        g2=jnp.ones((1, D_H2), jnp.float32), beta2=jnp.zeros((1, D_H2), jnp.float32),
        w3=w3.astype(jnp.bfloat16), b3=b3,
    )


@functools.partial(jax.jit, static_argnames=("bt_max",))
def student_tower_forward(num, code, prof, params, bt_max=512):
    # glue: embedding gathers + feature concat (matches torch.cat([num, e_code, e_prof], -1))
    e_code = params["emb_code"][code]
    e_prof = params["emb_prof"][prof]
    x = jnp.concatenate([num, e_code, e_prof], axis=-1).astype(jnp.float32)

    b = x.shape[0]
    bt = _choose_tile(b, bt_max)
    bp = _round_up(b, bt)
    if bp != b:
        x = jnp.pad(x, ((0, bp - b), (0, 0)))   # zero rows -> well-defined outputs, sliced off

    rep = lambda i: (0, 0)
    in_specs = [
        pl.BlockSpec((bt, D_IN), lambda i: (i, 0)),   # lane dim == full array dim (74)
        pl.BlockSpec((D_IN_PAD, D_H1), rep), pl.BlockSpec((1, D_H1), rep),
        pl.BlockSpec((1, D_H1), rep), pl.BlockSpec((1, D_H1), rep),
        pl.BlockSpec((D_H1, D_H2), rep), pl.BlockSpec((1, D_H2), rep),
        pl.BlockSpec((1, D_H2), rep), pl.BlockSpec((1, D_H2), rep),
        pl.BlockSpec((D_H2, D_OUT), rep), pl.BlockSpec((1, D_OUT), rep),
    ]

    flops = 2 * bp * (D_IN_PAD * D_H1 + D_H1 * D_H2 + D_H2 * D_OUT)
    transcendentals = bp * (D_H1 + D_H2 + 3)            # erf recips + LN / normalize rsqrts
    bytes_accessed = (4 * bp * (D_IN + D_OUT)                               # f32 x in, f32 out
                      + 2 * (D_IN_PAD * D_H1 + D_H1 * D_H2 + D_H2 * D_OUT)  # bf16 weights
                      + 4 * (4 * D_H1 + 4 * D_H2 + D_OUT))                  # f32 bias/LN vectors

    out = pl.pallas_call(
        student_tower_kernel,
        out_shape=jax.ShapeDtypeStruct((bp, D_OUT), jnp.float32),
        grid=(bp // bt,),
        in_specs=in_specs,
        out_specs=pl.BlockSpec((bt, D_OUT), lambda i: (i, 0)),
        scratch_shapes=[pltpu.VMEM((bt, D_IN_PAD), jnp.float32)],
        compiler_params=pltpu.CompilerParams(dimension_semantics=("parallel",)),
        cost_estimate=pl.CostEstimate(flops=flops,
                                      transcendentals=transcendentals,
                                      bytes_accessed=bytes_accessed),
    )(x, params["w1"], params["b1"], params["g1"], params["beta1"],
      params["w2"], params["b2"], params["g2"], params["beta2"],
      params["w3"], params["b3"])
    return out[:b]


def _reference_forward(num, code, prof, params):
    """Pure-JAX f32 reference (exact erf GELU, two-pass centered LayerNorm, exact divides)."""
    x = jnp.concatenate([num, params["emb_code"][code], params["emb_prof"][prof]], -1)
    w1 = params["w1"].astype(jnp.float32)[:D_IN]
    w2 = params["w2"].astype(jnp.float32)
    w3 = params["w3"].astype(jnp.float32)

    def ln(v, g, b):
        mu = jnp.mean(v, -1, keepdims=True)
        var = jnp.mean((v - mu) ** 2, -1, keepdims=True)
        return (v - mu) / jnp.sqrt(var + LN_EPS) * g + b

    h = x @ w1 + params["b1"]
    h = jax.nn.gelu(ln(h, params["g1"], params["beta1"]), approximate=False)
    h = h @ w2 + params["b2"]
    h = jax.nn.gelu(ln(h, params["g2"], params["beta2"]), approximate=False)
    h = h @ w3 + params["b3"]
    n = jnp.sqrt(jnp.sum(h * h, -1, keepdims=True))
    return h / jnp.maximum(n, NORM_EPS)


if __name__ == "__main__":
    key = jax.random.PRNGKey(0)
    k_p, k_num, k_code, k_prof = jax.random.split(key, 4)

    n_code, n_prof = 20, 7
    params = init_params(k_p, n_code, n_prof)

    # bf16 MXU operands (activation casts) add ~2^-9 relative error per matmul input;
    # the EUP approx reciprocal inside erf adds ~2^-12.  Typical drift on the final
    # L2-normalized outputs is O(1e-4); 2e-3 absolute leaves headroom on worst-case elements.
    ATOL, RTOL = 2e-3, 1e-3

    # small batch (single 8-row tile path)
    batch = 8
    num = jax.random.normal(k_num, (batch, D_NUM), jnp.float32)
    code = jax.random.randint(k_code, (batch,), 0, n_code, jnp.int32)
    prof = jax.random.randint(k_prof, (batch,), 0, n_prof, jnp.int32)

    out = jax.block_until_ready(student_tower_forward(num, code, prof, params))
    ref = _reference_forward(num, code, prof, params)
    assert out.shape == (batch, D_OUT) and out.dtype == jnp.float32
    assert jnp.allclose(out, ref, atol=ATOL, rtol=RTOL)

    # larger batch: 600 rows -> tile 304, two "parallel" grid steps, only 8 padded rows
    batch2 = 600
    num2 = jax.random.normal(k_num, (batch2, D_NUM), jnp.float32)
    code2 = jax.random.randint(k_code, (batch2,), 0, n_code, jnp.int32)
    prof2 = jax.random.randint(k_prof, (batch2,), 0, n_prof, jnp.int32)

    out2 = jax.block_until_ready(student_tower_forward(num2, code2, prof2, params))
    ref2 = _reference_forward(num2, code2, prof2, params)
    assert out2.shape == (batch2, D_OUT)
    assert jnp.allclose(out2, ref2, atol=ATOL, rtol=RTOL)

    print("KERNEL_OK")
</pallas_src>

<mosaic_0001>
module attributes {stable_mosaic.version = 11 : i64} {
  func.func @student_tower_kernel(%arg0: i32, %arg1: memref<8x74xf32, #tpu.memory_space<vmem>>, %arg2: memref<128x256xbf16, #tpu.memory_space<vmem>>, %arg3: memref<1x256xf32, #tpu.memory_space<vmem>>, %arg4: memref<1x256xf32, #tpu.memory_space<vmem>>, %arg5: memref<1x256xf32, #tpu.memory_space<vmem>>, %arg6: memref<256x128xbf16, #tpu.memory_space<vmem>>, %arg7: memref<1x128xf32, #tpu.memory_space<vmem>>, %arg8: memref<1x128xf32, #tpu.memory_space<vmem>>, %arg9: memref<1x128xf32, #tpu.memory_space<vmem>>, %arg10: memref<128x384xbf16, #tpu.memory_space<vmem>>, %arg11: memref<1x384xf32, #tpu.memory_space<vmem>>, %arg12: memref<8x384xf32, #tpu.memory_space<vmem>>, %arg13: memref<8x128xf32, #tpu.memory_space<vmem>>) attributes {dimension_semantics = [#tpu.dimension_semantics<parallel>], iteration_bounds = array<i64: 1>, scalar_prefetch = 0 : i64, scratch_operands = 1 : i64, tpu.core_type = #tpu.core_type<tc>, window_params = [{transform_indices = @transform_0, window_bounds = array<i64: 8, 74>}, {pipeline_mode = #tpu.pipeline_mode<synchronous>, transform_indices = @transform_1, window_bounds = array<i64: 128, 256>}, {pipeline_mode = #tpu.pipeline_mode<synchronous>, transform_indices = @transform_2, window_bounds = array<i64: 1, 256>}, {pipeline_mode = #tpu.pipeline_mode<synchronous>, transform_indices = @transform_3, window_bounds = array<i64: 1, 256>}, {pipeline_mode = #tpu.pipeline_mode<synchronous>, transform_indices = @transform_4, window_bounds = array<i64: 1, 256>}, {pipeline_mode = #tpu.pipeline_mode<synchronous>, transform_indices = @transform_5, window_bounds = array<i64: 256, 128>}, {pipeline_mode = #tpu.pipeline_mode<synchronous>, transform_indices = @transform_6, window_bounds = array<i64: 1, 128>}, {pipeline_mode = #tpu.pipeline_mode<synchronous>, transform_indices = @transform_7, window_bounds = array<i64: 1, 128>}, {pipeline_mode = #tpu.pipeline_mode<synchronous>, transform_indices = @transform_8, window_bounds = array<i64: 1, 128>}, {pipeline_mode = #tpu.pipeline_mode<synchronous>, transform_indices = @transform_9, window_bounds = array<i64: 128, 384>}, {pipeline_mode = #tpu.pipeline_mode<synchronous>, transform_indices = @transform_10, window_bounds = array<i64: 1, 384>}, {transform_indices = @transform_11, window_bounds = array<i64: 8, 384>}]} {
    %cst = arith.constant 0.000000e+00 : f32
    %0 = vector.broadcast %cst : f32 to vector<8x54xf32>
    %c0 = arith.constant 0 : index
    %c74 = arith.constant 74 : index
    %1 = vector.load %arg13[%c0, %c74] : memref<8x128xf32, #tpu.memory_space<vmem>>, vector<8x54xf32>
    tpu.vector_store %arg13[%c0, %c74], %0 {strides = array<i32>} : memref<8x128xf32, #tpu.memory_space<vmem>>, vector<8x54xf32>,
    %c0_0 = arith.constant 0 : index
    %c0_1 = arith.constant 0 : index
    %2 = vector.load %arg1[%c0_0, %c0_1] : memref<8x74xf32, #tpu.memory_space<vmem>>, vector<8x74xf32>
    %c0_2 = arith.constant 0 : index
    %c0_3 = arith.constant 0 : index
    %3 = vector.load %arg13[%c0_2, %c0_3] : memref<8x128xf32, #tpu.memory_space<vmem>>, vector<8x74xf32>
    tpu.vector_store %arg13[%c0_2, %c0_3], %2 {strides = array<i32>} : memref<8x128xf32, #tpu.memory_space<vmem>>, vector<8x74xf32>,
    %c0_4 = arith.constant 0 : index
    %c0_5 = arith.constant 0 : index
    %4 = vector.load %arg13[%c0_4, %c0_5] : memref<8x128xf32, #tpu.memory_space<vmem>>, vector<8x128xf32>
    %5 = arith.truncf %4 : vector<8x128xf32> to vector<8x128xbf16>
    %c0_6 = arith.constant 0 : index
    %c0_7 = arith.constant 0 : index
    %6 = vector.load %arg2[%c0_6, %c0_7] : memref<128x256xbf16, #tpu.memory_space<vmem>>, vector<128x256xbf16>
    %cst_8 = arith.constant dense<0.000000e+00> : vector<8x256xf32>
    %7 = tpu.matmul %5, %6, %cst_8 {dimension_numbers = #tpu.dot_dimension_numbers<[1], [0], [0], [1], [0, 0, 1, 1], [], []>} : vector<8x128xbf16>, vector<128x256xbf16>, vector<8x256xf32> -> vector<8x256xf32>
    %c0_9 = arith.constant 0 : index
    %c0_10 = arith.constant 0 : index
    %8 = vector.load %arg3[%c0_9, %c0_10] : memref<1x256xf32, #tpu.memory_space<vmem>>, vector<1x256xf32>
    %9 = vector.broadcast %8 : vector<1x256xf32> to vector<8x256xf32>
    %10 = arith.addf %7, %9 : vector<8x256xf32>
    %c0_11 = arith.constant 0 : index
    %c0_12 = arith.constant 0 : index
    %11 = vector.load %arg4[%c0_11, %c0_12] : memref<1x256xf32, #tpu.memory_space<vmem>>, vector<1x256xf32>
    %c0_13 = arith.constant 0 : index
    %c0_14 = arith.constant 0 : index
    %12 = vector.load %arg5[%c0_13, %c0_14] : memref<1x256xf32, #tpu.memory_space<vmem>>, vector<1x256xf32>
    %cst_15 = arith.constant dense<0.000000e+00> : vector<8xf32>
    %13 = vector.multi_reduction <add>, %10, %cst_15 [1] : vector<8x256xf32> to vector<8xf32>
    %14 = vector.shape_cast %13 : vector<8xf32> to vector<8x1xf32>
    %15 = arith.mulf %10, %10 : vector<8x256xf32>
    %cst_16 = arith.constant dense<0.000000e+00> : vector<8xf32>
    %16 = vector.multi_reduction <add>, %15, %cst_16 [1] : vector<8x256xf32> to vector<8xf32>
    %17 = vector.shape_cast %16 : vector<8xf32> to vector<8x1xf32>
    %cst_17 = arith.constant 3.906250e-03 : f32
    %18 = vector.broadcast %cst_17 : f32 to vector<8x1xf32>
    %19 = arith.mulf %14, %18 : vector<8x1xf32>
    %cst_18 = arith.constant 3.906250e-03 : f32
    %20 = vector.broadcast %cst_18 : f32 to vector<8x1xf32>
    %21 = arith.mulf %17, %20 : vector<8x1xf32>
    %22 = arith.mulf %19, %19 : vector<8x1xf32>
    %23 = arith.subf %21, %22 : vector<8x1xf32>
    %cst_19 = arith.constant 0.000000e+00 : f32
    %24 = vector.broadcast %cst_19 : f32 to vector<8x1xf32>
    %25 = arith.maximumf %23, %24 : vector<8x1xf32>
    %cst_20 = arith.constant 9.99999974E-6 : f32
    %26 = vector.broadcast %cst_20 : f32 to vector<8x1xf32>
    %27 = arith.addf %25, %26 : vector<8x1xf32>
    %28 = math.rsqrt %27 : vector<8x1xf32>
    %29 = vector.broadcast %19 : vector<8x1xf32> to vector<8x256xf32>
    %30 = arith.subf %10, %29 : vector<8x256xf32>
    %31 = vector.broadcast %28 : vector<8x1xf32> to vector<8x256xf32>
    %32 = arith.mulf %30, %31 : vector<8x256xf32>
    %33 = vector.broadcast %11 : vector<1x256xf32> to vector<8x256xf32>
    %34 = arith.mulf %32, %33 : vector<8x256xf32>
    %35 = vector.broadcast %12 : vector<1x256xf32> to vector<8x256xf32>
    %36 = arith.addf %34, %35 : vector<8x256xf32>
    %cst_21 = arith.constant 5.000000e-01 : f32
    %37 = vector.broadcast %cst_21 : f32 to vector<8x256xf32>
    %38 = arith.mulf %37, %36 : vector<8x256xf32>
    %cst_22 = arith.constant 0.707106769 : f32
    %39 = vector.broadcast %cst_22 : f32 to vector<8x256xf32>
    %40 = arith.mulf %36, %39 : vector<8x256xf32>
    %cst_23 = arith.constant 0.000000e+00 : f32
    %cst_24 = arith.constant 3.8325069 : f32
    %41 = arith.subf %cst_23, %cst_24 : f32
    %cst_25 = arith.constant 3.8325069 : f32
    %42 = vector.broadcast %41 : f32 to vector<8x256xf32>
    %43 = arith.maximumf %42, %40 : vector<8x256xf32>
    %44 = vector.broadcast %cst_25 : f32 to vector<8x256xf32>
    %45 = arith.minimumf %44, %43 : vector<8x256xf32>
    %46 = arith.mulf %45, %45 : vector<8x256xf32>
    %cst_26 = arith.constant 2.29050653E-4 : f32
    %47 = vector.broadcast %cst_26 : f32 to vector<8x256xf32>
    %48 = arith.mulf %47, %46 : vector<8x256xf32>
    %cst_27 = arith.constant 0.00340829091 : f32
    %49 = vector.broadcast %cst_27 : f32 to vector<8x256xf32>
    %50 = arith.addf %48, %49 : vector<8x256xf32>
    %51 = arith.mulf %50, %46 : vector<8x256xf32>
    %cst_28 = arith.constant 0.0509556942 : f32
    %52 = vector.broadcast %cst_28 : f32 to vector<8x256xf32>
    %53 = arith.addf %51, %52 : vector<8x256xf32>
    %54 = arith.mulf %53, %46 : vector<8x256xf32>
    %cst_29 = arith.constant 0.185208321 : f32
    %55 = vector.broadcast %cst_29 : f32 to vector<8x256xf32>
    %56 = arith.addf %54, %55 : vector<8x256xf32>
    %57 = arith.mulf %56, %46 : vector<8x256xf32>
    %cst_30 = arith.constant 1.12837911 : f32
    %58 = vector.broadcast %cst_30 : f32 to vector<8x256xf32>
    %59 = arith.addf %57, %58 : vector<8x256xf32>
    %cst_31 = arith.constant -1.17916031E-7 : f32
    %60 = vector.broadcast %cst_31 : f32 to vector<8x256xf32>
    %61 = arith.mulf %60, %46 : vector<8x256xf32>
    %cst_32 = arith.constant 2.35479656E-5 : f32
    %62 = vector.broadcast %cst_32 : f32 to vector<8x256xf32>
    %63 = arith.addf %61, %62 : vector<8x256xf32>
    %64 = arith.mulf %63, %46 : vector<8x256xf32>
    %cst_33 = arith.constant 0.00101796258 : f32
    %65 = vector.broadcast %cst_33 : f32 to vector<8x256xf32>
    %66 = arith.addf %64, %65 : vector<8x256xf32>
    %67 = arith.mulf %66, %46 : vector<8x256xf32>
    %cst_34 = arith.constant 0.0140704699 : f32
    %68 = vector.broadcast %cst_34 : f32 to vector<8x256xf32>
    %69 = arith.addf %67, %68 : vector<8x256xf32>
    %70 = arith.mulf %69, %46 : vector<8x256xf32>
    %cst_35 = arith.constant 0.110985048 : f32
    %71 = vector.broadcast %cst_35 : f32 to vector<8x256xf32>
    %72 = arith.addf %70, %71 : vector<8x256xf32>
    %73 = arith.mulf %72, %46 : vector<8x256xf32>
    %cst_36 = arith.constant 0.497469246 : f32
    %74 = vector.broadcast %cst_36 : f32 to vector<8x256xf32>
    %75 = arith.addf %73, %74 : vector<8x256xf32>
    %76 = arith.mulf %75, %46 : vector<8x256xf32>
    %cst_37 = arith.constant 1.000000e+00 : f32
    %77 = vector.broadcast %cst_37 : f32 to vector<8x256xf32>
    %78 = arith.addf %76, %77 : vector<8x256xf32>
    %79 = arith.mulf %45, %59 : vector<8x256xf32>
    %80 = tpu.reciprocal %78 {approx = true} : vector<8x256xf32> -> vector<8x256xf32>
    %81 = arith.mulf %79, %80 : vector<8x256xf32>
    %cst_38 = arith.constant 1.000000e+00 : f32
    %82 = vector.broadcast %cst_38 : f32 to vector<8x256xf32>
    %83 = arith.addf %82, %81 : vector<8x256xf32>
    %84 = arith.mulf %38, %83 : vector<8x256xf32>
    %85 = arith.truncf %84 : vector<8x256xf32> to vector<8x256xbf16>
    %c0_39 = arith.constant 0 : index
    %c0_40 = arith.constant 0 : index
    %86 = vector.load %arg6[%c0_39, %c0_40] : memref<256x128xbf16, #tpu.memory_space<vmem>>, vector<256x128xbf16>
    %cst_41 = arith.constant dense<0.000000e+00> : vector<8x128xf32>
    %87 = tpu.matmul %85, %86, %cst_41 {dimension_numbers = #tpu.dot_dimension_numbers<[1], [0], [0], [1], [0, 0, 1, 1], [], []>} : vector<8x256xbf16>, vector<256x128xbf16>, vector<8x128xf32> -> vector<8x128xf32>
    %c0_42 = arith.constant 0 : index
    %c0_43 = arith.constant 0 : index
    %88 = vector.load %arg7[%c0_42, %c0_43] : memref<1x128xf32, #tpu.memory_space<vmem>>, vector<1x128xf32>
    %89 = vector.broadcast %88 : vector<1x128xf32> to vector<8x128xf32>
    %90 = arith.addf %87, %89 : vector<8x128xf32>
    %c0_44 = arith.constant 0 : index
    %c0_45 = arith.constant 0 : index
    %91 = vector.load %arg8[%c0_44, %c0_45] : memref<1x128xf32, #tpu.memory_space<vmem>>, vector<1x128xf32>
    %c0_46 = arith.constant 0 : index
    %c0_47 = arith.constant 0 : index
    %92 = vector.load %arg9[%c0_46, %c0_47] : memref<1x128xf32, #tpu.memory_space<vmem>>, vector<1x128xf32>
    %cst_48 = arith.constant dense<0.000000e+00> : vector<8xf32>
    %93 = vector.multi_reduction <add>, %90, %cst_48 [1] : vector<8x128xf32> to vector<8xf32>
    %94 = vector.shape_cast %93 : vector<8xf32> to vector<8x1xf32>
    %95 = arith.mulf %90, %90 : vector<8x128xf32>
    %cst_49 = arith.constant dense<0.000000e+00> : vector<8xf32>
    %96 = vector.multi_reduction <add>, %95, %cst_49 [1] : vector<8x128xf32> to vector<8xf32>
    %97 = vector.shape_cast %96 : vector<8xf32> to vector<8x1xf32>
    %cst_50 = arith.constant 7.812500e-03 : f32
    %98 = vector.broadcast %cst_50 : f32 to vector<8x1xf32>
    %99 = arith.mulf %94, %98 : vector<8x1xf32>
    %cst_51 = arith.constant 7.812500e-03 : f32
    %100 = vector.broadcast %cst_51 : f32 to vector<8x1xf32>
    %101 = arith.mulf %97, %100 : vector<8x1xf32>
    %102 = arith.mulf %99, %99 : vector<8x1xf32>
    %103 = arith.subf %101, %102 : vector<8x1xf32>
    %cst_52 = arith.constant 0.000000e+00 : f32
    %104 = vector.broadcast %cst_52 : f32 to vector<8x1xf32>
    %105 = arith.maximumf %103, %104 : vector<8x1xf32>
    %cst_53 = arith.constant 9.99999974E-6 : f32
    %106 = vector.broadcast %cst_53 : f32 to vector<8x1xf32>
    %107 = arith.addf %105, %106 : vector<8x1xf32>
    %108 = math.rsqrt %107 : vector<8x1xf32>
    %109 = vector.broadcast %99 : vector<8x1xf32> to vector<8x128xf32>
    %110 = arith.subf %90, %109 : vector<8x128xf32>
    %111 = vector.broadcast %108 : vector<8x1xf32> to vector<8x128xf32>
    %112 = arith.mulf %110, %111 : vector<8x128xf32>
    %113 = vector.broadcast %91 : vector<1x128xf32> to vector<8x128xf32>
    %114 = arith.mulf %112, %113 : vector<8x128xf32>
    %115 = vector.broadcast %92 : vector<1x128xf32> to vector<8x128xf32>
    %116 = arith.addf %114, %115 : vector<8x128xf32>
    %cst_54 = arith.constant 5.000000e-01 : f32
    %117 = vector.broadcast %cst_54 : f32 to vector<8x128xf32>
    %118 = arith.mulf %117, %116 : vector<8x128xf32>
    %cst_55 = arith.constant 0.707106769 : f32
    %119 = vector.broadcast %cst_55 : f32 to vector<8x128xf32>
    %120 = arith.mulf %116, %119 : vector<8x128xf32>
    %cst_56 = arith.constant 0.000000e+00 : f32
    %cst_57 = arith.constant 3.8325069 : f32
    %121 = arith.subf %cst_56, %cst_57 : f32
    %cst_58 = arith.constant 3.8325069 : f32
    %122 = vector.broadcast %121 : f32 to vector<8x128xf32>
    %123 = arith.maximumf %122, %120 : vector<8x128xf32>
    %124 = vector.broadcast %cst_58 : f32 to vector<8x128xf32>
    %125 = arith.minimumf %124, %123 : vector<8x128xf32>
    %126 = arith.mulf %125, %125 : vector<8x128xf32>
    %cst_59 = arith.constant 2.29050653E-4 : f32
    %127 = vector.broadcast %cst_59 : f32 to vector<8x128xf32>
    %128 = arith.mulf %127, %126 : vector<8x128xf32>
    %cst_60 = arith.constant 0.00340829091 : f32
    %129 = vector.broadcast %cst_60 : f32 to vector<8x128xf32>
    %130 = arith.addf %128, %129 : vector<8x128xf32>
    %131 = arith.mulf %130, %126 : vector<8x128xf32>
    %cst_61 = arith.constant 0.0509556942 : f32
    %132 = vector.broadcast %cst_61 : f32 to vector<8x128xf32>
    %133 = arith.addf %131, %132 : vector<8x128xf32>
    %134 = arith.mulf %133, %126 : vector<8x128xf32>
    %cst_62 = arith.constant 0.185208321 : f32
    %135 = vector.broadcast %cst_62 : f32 to vector<8x128xf32>
    %136 = arith.addf %134, %135 : vector<8x128xf32>
    %137 = arith.mulf %136, %126 : vector<8x128xf32>
    %cst_63 = arith.constant 1.12837911 : f32
    %138 = vector.broadcast %cst_63 : f32 to vector<8x128xf32>
    %139 = arith.addf %137, %138 : vector<8x128xf32>
    %cst_64 = arith.constant -1.17916031E-7 : f32
    %140 = vector.broadcast %cst_64 : f32 to vector<8x128xf32>
    %141 = arith.mulf %140, %126 : vector<8x128xf32>
    %cst_65 = arith.constant 2.35479656E-5 : f32
    %142 = vector.broadcast %cst_65 : f32 to vector<8x128xf32>
    %143 = arith.addf %141, %142 : vector<8x128xf32>
    %144 = arith.mulf %143, %126 : vector<8x128xf32>
    %cst_66 = arith.constant 0.00101796258 : f32
    %145 = vector.broadcast %cst_66 : f32 to vector<8x128xf32>
    %146 = arith.addf %144, %145 : vector<8x128xf32>
    %147 = arith.mulf %146, %126 : vector<8x128xf32>
    %cst_67 = arith.constant 0.0140704699 : f32
    %148 = vector.broadcast %cst_67 : f32 to vector<8x128xf32>
    %149 = arith.addf %147, %148 : vector<8x128xf32>
    %150 = arith.mulf %149, %126 : vector<8x128xf32>
    %cst_68 = arith.constant 0.110985048 : f32
    %151 = vector.broadcast %cst_68 : f32 to vector<8x128xf32>
    %152 = arith.addf %150, %151 : vector<8x128xf32>
    %153 = arith.mulf %152, %126 : vector<8x128xf32>
    %cst_69 = arith.constant 0.497469246 : f32
    %154 = vector.broadcast %cst_69 : f32 to vector<8x128xf32>
    %155 = arith.addf %153, %154 : vector<8x128xf32>
    %156 = arith.mulf %155, %126 : vector<8x128xf32>
    %cst_70 = arith.constant 1.000000e+00 : f32
    %157 = vector.broadcast %cst_70 : f32 to vector<8x128xf32>
    %158 = arith.addf %156, %157 : vector<8x128xf32>
    %159 = arith.mulf %125, %139 : vector<8x128xf32>
    %160 = tpu.reciprocal %158 {approx = true} : vector<8x128xf32> -> vector<8x128xf32>
    %161 = arith.mulf %159, %160 : vector<8x128xf32>
    %cst_71 = arith.constant 1.000000e+00 : f32
    %162 = vector.broadcast %cst_71 : f32 to vector<8x128xf32>
    %163 = arith.addf %162, %161 : vector<8x128xf32>
    %164 = arith.mulf %118, %163 : vector<8x128xf32>
    %165 = arith.truncf %164 : vector<8x128xf32> to vector<8x128xbf16>
    %c0_72 = arith.constant 0 : index
    %c0_73 = arith.constant 0 : index
    %166 = vector.load %arg10[%c0_72, %c0_73] : memref<128x384xbf16, #tpu.memory_space<vmem>>, vector<128x384xbf16>
    %cst_74 = arith.constant dense<0.000000e+00> : vector<8x384xf32>
    %167 = tpu.matmul %165, %166, %cst_74 {dimension_numbers = #tpu.dot_dimension_numbers<[1], [0], [0], [1], [0, 0, 1, 1], [], []>} : vector<8x128xbf16>, vector<128x384xbf16>, vector<8x384xf32> -> vector<8x384xf32>
    %c0_75 = arith.constant 0 : index
    %c0_76 = arith.constant 0 : index
    %168 = vector.load %arg11[%c0_75, %c0_76] : memref<1x384xf32, #tpu.memory_space<vmem>>, vector<1x384xf32>
    %169 = vector.broadcast %168 : vector<1x384xf32> to vector<8x384xf32>
    %170 = arith.addf %167, %169 : vector<8x384xf32>
    %171 = arith.mulf %170, %170 : vector<8x384xf32>
    %cst_77 = arith.constant dense<0.000000e+00> : vector<8xf32>
    %172 = vector.multi_reduction <add>, %171, %cst_77 [1] : vector<8x384xf32> to vector<8xf32>
    %173 = vector.shape_cast %172 : vector<8xf32> to vector<8x1xf32>
    %cst_78 = arith.constant 1.000000e-24 : f32
    %174 = vector.broadcast %cst_78 : f32 to vector<8x1xf32>
    %175 = arith.maximumf %173, %174 : vector<8x1xf32>
    %176 = math.rsqrt %175 : vector<8x1xf32>
    %177 = vector.broadcast %176 : vector<8x1xf32> to vector<8x384xf32>
    %178 = arith.mulf %170, %177 : vector<8x384xf32>
    %c0_79 = arith.constant 0 : index
    %c0_80 = arith.constant 0 : index
    %179 = vector.load %arg12[%c0_79, %c0_80] : memref<8x384xf32, #tpu.memory_space<vmem>>, vector<8x384xf32>
    tpu.vector_store %arg12[%c0_79, %c0_80], %178 {strides = array<i32>} : memref<8x384xf32, #tpu.memory_space<vmem>>, vector<8x384xf32>,
    return
  }
  func.func @transform_0(%arg0: i32) -> (i32, i32) {
    %c0_i32 = arith.constant 0 : i32
    %c0_i32_0 = arith.constant 0 : i32
    return %arg0, %c0_i32 : i32, i32
  }
  func.func @transform_1(%arg0: i32) -> (i32, i32) {
    %c0_i32 = arith.constant 0 : i32
    %c0_i32_0 = arith.constant 0 : i32
    %c0_i32_1 = arith.constant 0 : i32
    return %c0_i32, %c0_i32_0 : i32, i32
  }
  func.func @transform_2(%arg0: i32) -> (i32, i32) {
    %c0_i32 = arith.constant 0 : i32
    %c0_i32_0 = arith.constant 0 : i32
    %c0_i32_1 = arith.constant 0 : i32
    return %c0_i32, %c0_i32_0 : i32, i32
  }
  func.func @transform_3(%arg0: i32) -> (i32, i32) {
    %c0_i32 = arith.constant 0 : i32
    %c0_i32_0 = arith.constant 0 : i32
    %c0_i32_1 = arith.constant 0 : i32
    return %c0_i32, %c0_i32_0 : i32, i32
  }
  func.func @transform_4(%arg0: i32) -> (i32, i32) {
    %c0_i32 = arith.constant 0 : i32
    %c0_i32_0 = arith.constant 0 : i32
    %c0_i32_1 = arith.constant 0 : i32
    return %c0_i32, %c0_i32_0 : i32, i32
  }
  func.func @transform_5(%arg0: i32) -> (i32, i32) {
    %c0_i32 = arith.constant 0 : i32
    %c0_i32_0 = arith.constant 0 : i32
    %c0_i32_1 = arith.constant 0 : i32
    return %c0_i32, %c0_i32_0 : i32, i32
  }
  func.func @transform_6(%arg0: i32) -> (i32, i32) {
    %c0_i32 = arith.constant 0 : i32
    %c0_i32_0 = arith.constant 0 : i32
    %c0_i32_1 = arith.constant 0 : i32
    return %c0_i32, %c0_i32_0 : i32, i32
  }
  func.func @transform_7(%arg0: i32) -> (i32, i32) {
    %c0_i32 = arith.constant 0 : i32
    %c0_i32_0 = arith.constant 0 : i32
    %c0_i32_1 = arith.constant 0 : i32
    return %c0_i32, %c0_i32_0 : i32, i32
  }
  func.func @transform_8(%arg0: i32) -> (i32, i32) {
    %c0_i32 = arith.constant 0 : i32
    %c0_i32_0 = arith.constant 0 : i32
    %c0_i32_1 = arith.constant 0 : i32
    return %c0_i32, %c0_i32_0 : i32, i32
  }
  func.func @transform_9(%arg0: i32) -> (i32, i32) {
    %c0_i32 = arith.constant 0 : i32
    %c0_i32_0 = arith.constant 0 : i32
    %c0_i32_1 = arith.constant 0 : i32
    return %c0_i32, %c0_i32_0 : i32, i32
  }
  func.func @transform_10(%arg0: i32) -> (i32, i32) {
    %c0_i32 = arith.constant 0 : i32
    %c0_i32_0 = arith.constant 0 : i32
    %c0_i32_1 = arith.constant 0 : i32
    return %c0_i32, %c0_i32_0 : i32, i32
  }
  func.func @transform_11(%arg0: i32) -> (i32, i32) {
    %c0_i32 = arith.constant 0 : i32
    %c0_i32_0 = arith.constant 0 : i32
    return %arg0, %c0_i32 : i32, i32
  }
}

</mosaic_0001>

<llo_original>
// kernel: student_tower_forward.1
$region0: #{student_tower_forward.1}
  #allocation0 [shape = 'u32[]', space=smem, size = 0x4, offset = 0x4, fixed_abs, tag = 'smem constant byte address 0x4 - core index']
  #allocation1 [shape = 'u32[144,128]{1,0:T(1,128)}', space=vmem, size = 0x12000, scoped, tag = 'internal scratch']
  #allocation2 [shape = 'f32[8,128]{1,0:T(8,128)}', space=vmem, size = 0x1000, scoped, tag = 'scratch operand']
  %s0 = inlined_call_operand.vmem [shape: f32[8,74], index: 0, kind: input, shape index: {}]
  %s1 = inlined_call_operand.hbm [shape: bf16[128,256], index: 1, kind: input, shape index: {}]
  %s2 = inlined_call_operand.vmem [shape: f32[1,256], index: 2, kind: input, shape index: {}]
  %s3 = inlined_call_operand.vmem [shape: f32[1,256], index: 3, kind: input, shape index: {}]
  %s4 = inlined_call_operand.vmem [shape: f32[1,256], index: 4, kind: input, shape index: {}]
  %s5 = inlined_call_operand.hbm [shape: bf16[256,128], index: 5, kind: input, shape index: {}]
  %s6 = inlined_call_operand.vmem [shape: f32[1,128], index: 6, kind: input, shape index: {}]
  %s7 = inlined_call_operand.vmem [shape: f32[1,128], index: 7, kind: input, shape index: {}]
  %s8 = inlined_call_operand.vmem [shape: f32[1,128], index: 8, kind: input, shape index: {}]
  %s9 = inlined_call_operand.vmem [shape: bf16[128,384], index: 9, kind: input, shape index: {}]
  %s10 = inlined_call_operand.vmem [shape: f32[1,384], index: 10, kind: input, shape index: {}]
  %s11 = inlined_call_operand.hbm [shape: f32[8,384], index: 11, kind: output, shape index: {}]
  %s12 = sld [smem:[#allocation0]]
  $region62: #{student_tower_forward.1} parent=0
    _
  %s14 = ssub.s32 1, %s12
  %s15 = scalar_select 0, %s14, %s12
  $region1: #{student_tower_forward.1} parent=0
    #allocation3 [shape = 'u8[65536]{0}', space=vmem, size = 0x10000, scoped, tag = 'input window, operand 1, single buffered']
    #allocation4 [shape = 's32[1]{0}', space=sflag, size = 0x4, scoped, tag = 'scoped memory for student_tower_forward.1']
    #allocation5 [shape = 's32[1]{0}', space=sflag, size = 0x4, scoped, tag = 'scoped memory for student_tower_forward.1']
    #allocation6 [shape = 'u8[65536]{0}', space=vmem, size = 0x10000, scoped, tag = 'input window, operand 5, single buffered']
    #allocation7 [shape = 's32[1]{0}', space=sflag, size = 0x4, scoped, tag = 'scoped memory for student_tower_forward.1']
    #allocation8 [shape = 'u8[12288]{0}', space=vmem, size = 0x3000, scoped, tag = 'output window, operand 0, single buffered']
    %16 = vsyncpa [#allocation4], 0
    %17 = vsyncpa [#allocation7], 0
    %18 = vsyncpa [#allocation5], 0
    // Predicated region
    $region2: #{student_tower_forward.1} parent=1 // pred_check
      _
    $region3: #{student_tower_forward.1} parent=1 // pred_check_branch
      %20 = sbr.rel (0) target = $region5
    $region4: #{student_tower_forward.1} parent=1 // pred_region
      _
    $region5: #{student_tower_forward.1} parent=1 // pred_fallthru
      _
    // Predicated region
    $region6: #{student_tower_forward.1} parent=1 // pred_check
      _
    $region7: #{student_tower_forward.1} parent=1 // pred_check_branch
      %22 = sbr.rel (0) target = $region9
    $region8: #{student_tower_forward.1} parent=1 // pred_region
      %s24 = ssub.s32 2048, 2048
      %25 = vsyncadd [#allocation4], %s24
      %s26 = sshll.u32 [#allocation3], 4
      %s27 = int_to_ptr.vmem [resolvable:$true] %s26
      %32 = dma.hbm_to_vmem [thread:$0]  %s1, 2048, %s27, [#allocation4], 128, 128, 8
    $region9: #{student_tower_forward.1} parent=1 // pred_fallthru
      _
    // Predicated region
    $region10: #{student_tower_forward.1} parent=1 // pred_check
      _
    $region11: #{student_tower_forward.1} parent=1 // pred_check_branch
      %34 = sbr.rel (0) target = $region13
    $region12: #{student_tower_forward.1} parent=1 // pred_region
      _
    $region13: #{student_tower_forward.1} parent=1 // pred_fallthru
      _
    // Predicated region
    $region14: #{student_tower_forward.1} parent=1 // pred_check
      _
    $region15: #{student_tower_forward.1} parent=1 // pred_check_branch
      %36 = sbr.rel (0) target = $region17
    $region16: #{student_tower_forward.1} parent=1 // pred_region
      _
    $region17: #{student_tower_forward.1} parent=1 // pred_fallthru
      _
    // Predicated region
    $region18: #{student_tower_forward.1} parent=1 // pred_check
      _
    $region19: #{student_tower_forward.1} parent=1 // pred_check_branch
      %38 = sbr.rel (0) target = $region21
    $region20: #{student_tower_forward.1} parent=1 // pred_region
      _
    $region21: #{student_tower_forward.1} parent=1 // pred_fallthru
      _
    // Predicated region
    $region22: #{student_tower_forward.1} parent=1 // pred_check
      _
    $region23: #{student_tower_forward.1} parent=1 // pred_check_branch
      %40 = sbr.rel (0) target = $region25
    $region24: #{student_tower_forward.1} parent=1 // pred_region
      %s42 = ssub.s32 2048, 2048
      %43 = vsyncadd [#allocation7], %s42
      %s44 = sshll.u32 [#allocation6], 4
      %s45 = int_to_ptr.vmem [resolvable:$true] %s44
      %50 = dma.hbm_to_vmem [thread:$0]  %s5, 2048, %s45, [#allocation7], 64, 64, 4
    $region25: #{student_tower_forward.1} parent=1 // pred_fallthru
      _
    // Predicated region
    $region26: #{student_tower_forward.1} parent=1 // pred_check
      _
    $region27: #{student_tower_forward.1} parent=1 // pred_check_branch
      %52 = sbr.rel (0) target = $region29
    $region28: #{student_tower_forward.1} parent=1 // pred_region
      _
    $region29: #{student_tower_forward.1} parent=1 // pred_fallthru
      _
    // Predicated region
    $region30: #{student_tower_forward.1} parent=1 // pred_check
      _
    $region31: #{student_tower_forward.1} parent=1 // pred_check_branch
      %54 = sbr.rel (0) target = $region33
    $region32: #{student_tower_forward.1} parent=1 // pred_region
      _
    $region33: #{student_tower_forward.1} parent=1 // pred_fallthru
      _
    // Predicated region
    $region34: #{student_tower_forward.1} parent=1 // pred_check
      _
    $region35: #{student_tower_forward.1} parent=1 // pred_check_branch
      %56 = sbr.rel (0) target = $region37
    $region36: #{student_tower_forward.1} parent=1 // pred_region
      _
    $region37: #{student_tower_forward.1} parent=1 // pred_fallthru
      _
    // Predicated region
    $region38: #{student_tower_forward.1} parent=1 // pred_check
      _
    $region39: #{student_tower_forward.1} parent=1 // pred_check_branch
      %58 = sbr.rel (0) target = $region41
    $region40: #{student_tower_forward.1} parent=1 // pred_region
      _
    $region41: #{student_tower_forward.1} parent=1 // pred_fallthru
      _
    // Predicated region
    $region42: #{student_tower_forward.1} parent=1 // pred_check
      _
    $region43: #{student_tower_forward.1} parent=1 // pred_check_branch
      %60 = sbr.rel (0) target = $region45
    $region44: #{student_tower_forward.1} parent=1 // pred_region
      _
    $region45: #{student_tower_forward.1} parent=1 // pred_fallthru
      _
    // Predicated region
    $region46: #{student_tower_forward.1} parent=1 // pred_check
      _
    $region47: #{student_tower_forward.1} parent=1 // pred_check_branch
      %62 = sbr.rel (0) target = $region49
    $region48: #{student_tower_forward.1} parent=1 // pred_region
      %63 = dma.done [#allocation4], 2048
    $region49: #{student_tower_forward.1} parent=1 // pred_fallthru
      _
    // Predicated region
    $region50: #{student_tower_forward.1} parent=1 // pred_check
      _
    $region51: #{student_tower_forward.1} parent=1 // pred_check_branch
      %65 = sbr.rel (0) target = $region53
    $region52: #{student_tower_forward.1} parent=1 // pred_region
      %66 = dma.done [#allocation7], 2048
    $region53: #{student_tower_forward.1} parent=1 // pred_fallthru
      _
    %vm68 = vcmask 1048144
    %69 = vst.msk [vmem:[#allocation2] sm:$0xff] %vm68, 0.0
    %v70 = vld [vmem:[%s0] sm:$0xff]
    %vm71 = vcmask 605184
    %72 = vst.msk [vmem:[#allocation2] sm:$0xff] %vm71, %v70
    %v73 = vld [vmem:[#allocation2] sm:$0xff]
    %v74 = vpack.c.bf16 %v73, %v73
    %v75 = vld [vmem:[#allocation3] sm:$0xff]
    %v76 = vld [vmem:[#allocation3 + $0x8] sm:$0xff]
    %v77 = vld [vmem:[#allocation3 + $0x10] sm:$0xff]
    %v78 = vld [vmem:[#allocation3 + $0x18] sm:$0xff]
    %v79 = vld [vmem:[#allocation3 + $0x20] sm:$0xff]
    %v80 = vld [vmem:[#allocation3 + $0x28] sm:$0xff]
    %v81 = vld [vmem:[#allocation3 + $0x30] sm:$0xff]
    %v82 = vld [vmem:[#allocation3 + $0x38] sm:$0xff]
    %v83 = vld [vmem:[#allocation3 + $0x40] sm:$0xff]
    %v84 = vld [vmem:[#allocation3 + $0x48] sm:$0xff]
    %v85 = vld [vmem:[#allocation3 + $0x50] sm:$0xff]
    %v86 = vld [vmem:[#allocation3 + $0x58] sm:$0xff]
    %v87 = vld [vmem:[#allocation3 + $0x60] sm:$0xff]
    %v88 = vld [vmem:[#allocation3 + $0x68] sm:$0xff]
    %v89 = vld [vmem:[#allocation3 + $0x70] sm:$0xff]
    %v90 = vld [vmem:[#allocation3 + $0x78] sm:$0xff]
    %v91 = vld [vmem:[%s2] sm:$0x3]
    %v93 = vlaneseq
    %v94 = vshrl.u32 %v93, 7
    %v95 = vsub.s32 0, %v94
    %v96 = vrot.slane %v91, %v95
    %v97 = vlaneseq
    %v98 = vshrl.u32 %v97, 7
    %v99 = vsub.s32 1, %v98
    %v100 = vrot.slane %v91, %v99
    %v119 = vunpack.c.l.b16 %v75
    %v120 = vunpack.c.h.b16 %v75
    %v121 = vunpack.c.l.b16 %v76
    %v122 = vunpack.c.h.b16 %v76
    %v123 = vunpack.c.l.b16 %v77
    %v124 = vunpack.c.h.b16 %v77
    %v125 = vunpack.c.l.b16 %v78
    %v126 = vunpack.c.h.b16 %v78
    %v127 = vunpack.c.l.b16 %v79
    %v128 = vunpack.c.h.b16 %v79
    %v129 = vunpack.c.l.b16 %v80
    %v130 = vunpack.c.h.b16 %v80
    %v131 = vunpack.c.l.b16 %v81
    %v132 = vunpack.c.h.b16 %v81
    %v133 = vunpack.c.l.b16 %v82
    %v134 = vunpack.c.h.b16 %v82
    %v135 = vunpack.c.l.b16 %v83
    %v136 = vunpack.c.h.b16 %v83
    %v137 = vunpack.c.l.b16 %v84
    %v138 = vunpack.c.h.b16 %v84
    %v139 = vunpack.c.l.b16 %v85
    %v140 = vunpack.c.h.b16 %v85
    %v141 = vunpack.c.l.b16 %v86
    %v142 = vunpack.c.h.b16 %v86
    %v143 = vunpack.c.l.b16 %v87
    %v144 = vunpack.c.h.b16 %v87
    %v145 = vunpack.c.l.b16 %v88
    %v146 = vunpack.c.h.b16 %v88
    %v147 = vunpack.c.l.b16 %v89
    %v148 = vunpack.c.h.b16 %v89
    %v149 = vunpack.c.l.b16 %v90
    %v150 = vunpack.c.h.b16 %v90
    %v151 = vpack.c.b16 %v121, %v119
    %v152 = vpack.c.b16 %v122, %v120
    %v153 = vpack.c.b16 %v125, %v123
    %v154 = vpack.c.b16 %v126, %v124
    %v155 = vpack.c.b16 %v129, %v127
    %v156 = vpack.c.b16 %v130, %v128
    %v157 = vpack.c.b16 %v133, %v131
    %v158 = vpack.c.b16 %v134, %v132
    %v159 = vpack.c.b16 %v137, %v135
    %v160 = vpack.c.b16 %v138, %v136
    %v161 = vpack.c.b16 %v141, %v139
    %v162 = vpack.c.b16 %v142, %v140
    %v163 = vpack.c.b16 %v145, %v143
    %v164 = vpack.c.b16 %v146, %v144
    %v165 = vpack.c.b16 %v149, %v147
    %v166 = vpack.c.b16 %v150, %v148
    %183 = vmatprep.subr.bf16.mxu0 %v152
    %184 = vmatpush1.bf16.msra.mxu0 %v151
    %185 = vmatprep.subr.bf16.mxu0 %v154
    %186 = vmatpush1.bf16.msra.mxu0 %v153
    %187 = vmatprep.subr.bf16.mxu0 %v156
    %188 = vmatpush1.bf16.msra.mxu0 %v155
    %189 = vmatprep.subr.bf16.mxu0 %v158
    %190 = vmatpush1.bf16.msra.mxu0 %v157
    %191 = vmatprep.subr.bf16.mxu0 %v160
    %192 = vmatpush1.bf16.msra.mxu0 %v159
    %193 = vmatprep.subr.bf16.mxu0 %v162
    %194 = vmatpush1.bf16.msra.mxu0 %v161
    %195 = vmatprep.subr.bf16.mxu0 %v164
    %196 = vmatpush1.bf16.msra.mxu0 %v163
    %197 = vmatprep.subr.bf16.mxu0 %v166
    %198 = vmatpush1.bf16.msra.mxu0 %v165
    %199 = vmatprep.subr.bf16.mxu0 0
    %200 = vmatpush1.bf16.msra.mxu0 0
    %201 = vmatprep.subr.bf16.mxu0 0
    %202 = vmatpush1.bf16.msra.mxu0 0
    %203 = vmatprep.subr.bf16.mxu0 0
    %204 = vmatpush1.bf16.msra.mxu0 0
    %205 = vmatprep.subr.bf16.mxu0 0
    %206 = vmatpush1.bf16.msra.mxu0 0
    %207 = vmatprep.subr.bf16.mxu0 0
    %208 = vmatpush1.bf16.msra.mxu0 0
    %209 = vmatprep.subr.bf16.mxu0 0
    %210 = vmatpush1.bf16.msra.mxu0 0
    %211 = vmatprep.subr.bf16.mxu0 0
    %212 = vmatpush1.bf16.msra.mxu0 0
    %213 = vmatprep.subr.bf16.mxu0 0
    %214 = vmatpush1.bf16.msra.mxu0 0
    %215 = vmatprep.mubr.bf16.mxu0 0
    %216 = vmatmul.mubr.bf16.gmra.mrb[0].mxu0 %v74
    %v217 = vpop.f32.mrb[0].mxu0
    %v218 = vadd.f32 %v96, %v217
    %v219 = vpop.f32.mrb[0].mxu0
    %v220 = vadd.f32 %v100, %v219
    %v221 = vpop.f32.mrb[0].mxu0
    %v222 = vpop.f32.mrb[0].mxu0
    %223 = vdwg.mxu0
    %v224 = vld [vmem:[%s3] sm:$0x3]
    %v225 = vld [vmem:[%s4] sm:$0x3]
    %v226 = vadd.f32 %v218, %v220
    %227 = vadd.xlane.f32.xlu0 %v226
    %v228 = vpop.xlane.xlu0 %227
    %v229 = vmul.f32 %v218, %v218
    %v230 = vmul.f32 %v220, %v220
    %v231 = vadd.f32 %v229, %v230
    %232 = vadd.xlane.f32.xlu0 %v231
    %v233 = vpop.xlane.xlu0 %232
    %v234 = vmul.f32 %v228, 0.00390625
    %v235 = vmul.f32 %v233, 0.00390625
    %v236 = vmul.f32 %v234, %v234
    %v237 = vsub.f32 %v235, %v236
    %v238 = vmax.f32 %v237, 0.0
    %v239 = vadd.f32 %v238, 1e-05
    %v240 = vrsqrt.pop %v239
    %v241 = vsub.f32 %v218, %v234
    %v242 = vsub.f32 %v220, %v234
    %v243 = vmul.f32 %v241, %v240
    %v244 = vmul.f32 %v242, %v240
    %v246 = vlaneseq
    %v247 = vshrl.u32 %v246, 7
    %v248 = vsub.s32 0, %v247
    %v249 = vrot.slane %v224, %v248
    %v250 = vlaneseq
    %v251 = vshrl.u32 %v250, 7
    %v252 = vsub.s32 1, %v251
    %v253 = vrot.slane %v224, %v252
    %v256 = vmul.f32 %v243, %v249
    %v257 = vmul.f32 %v244, %v253
    %v259 = vlaneseq
    %v260 = vshrl.u32 %v259, 7
    %v261 = vsub.s32 0, %v260
    %v262 = vrot.slane %v225, %v261
    %v263 = vlaneseq
    %v264 = vshrl.u32 %v263, 7
    %v265 = vsub.s32 1, %v264
    %v266 = vrot.slane %v225, %v265
    %v269 = vadd.f32 %v256, %v262
    %v270 = vadd.f32 %v257, %v266
    %v271 = vmul.f32 %v269, 0.5
    %v272 = vmul.f32 %v270, 0.5
    %v273 = vmul.f32 %v269, 0.70710677
    %v274 = vmul.f32 %v270, 0.70710677
    %v275 = vmax.f32 %v273, -3.832507
    %v276 = vmax.f32 %v274, -3.832507
    %v277 = vmin.f32 %v275, 3.832507
    %v278 = vmin.f32 %v276, 3.832507
    %v279 = vmul.f32 %v277, %v277
    %v280 = vmul.f32 %v278, %v278
    %v281 = vmul.f32 %v279, 0.00022905065
    %v282 = vmul.f32 %v280, 0.00022905065
    %v283 = vadd.f32 %v281, 0.003408291
    %v284 = vadd.f32 %v282, 0.003408291
    %v285 = vmul.f32 %v283, %v279
    %v286 = vmul.f32 %v284, %v280
    %v287 = vadd.f32 %v285, 0.050955694
    %v288 = vadd.f32 %v286, 0.050955694
    %v289 = vmul.f32 %v287, %v279
    %v290 = vmul.f32 %v288, %v280
    %v291 = vadd.f32 %v289, 0.18520832
    %v292 = vadd.f32 %v290, 0.18520832
    %v293 = vmul.f32 %v291, %v279
    %v294 = vmul.f32 %v292, %v280
    %v295 = vadd.f32 %v293, 1.1283791
    %v296 = vadd.f32 %v294, 1.1283791
    %v297 = vmul.f32 %v279, -1.1791603e-07
    %v298 = vmul.f32 %v280, -1.1791603e-07
    %v299 = vadd.f32 %v297, 2.3547966e-05
    %v300 = vadd.f32 %v298, 2.3547966e-05
    %v301 = vmul.f32 %v299, %v279
    %v302 = vmul.f32 %v300, %v280
    %v303 = vadd.f32 %v301, 0.0010179626
    %v304 = vadd.f32 %v302, 0.0010179626
    %v305 = vmul.f32 %v303, %v279
    %v306 = vmul.f32 %v304, %v280
    %v307 = vadd.f32 %v305, 0.01407047
    %v308 = vadd.f32 %v306, 0.01407047
    %v309 = vmul.f32 %v307, %v279
    %v310 = vmul.f32 %v308, %v280
    %v311 = vadd.f32 %v309, 0.11098505
    %v312 = vadd.f32 %v310, 0.11098505
    %v313 = vmul.f32 %v311, %v279
    %v314 = vmul.f32 %v312, %v280
    %v315 = vadd.f32 %v313, 0.49746925
    %v316 = vadd.f32 %v314, 0.49746925
    %v317 = vmul.f32 %v315, %v279
    %v318 = vmul.f32 %v316, %v280
    %v319 = vadd.f32 %v317, 1.0
    %v320 = vadd.f32 %v318, 1.0
    %v321 = vmul.f32 %v277, %v295
    %v322 = vmul.f32 %v278, %v296
    %v323 = vrcp.pop %v319
    %v324 = vrcp.pop %v320
    %v325 = vmul.f32 %v321, %v323
    %v326 = vmul.f32 %v322, %v324
    %v327 = vadd.f32 %v325, 1.0
    %v328 = vadd.f32 %v326, 1.0
    %v329 = vmul.f32 %v271, %v327
    %v330 = vmul.f32 %v272, %v328
    %v331 = vpack.c.bf16 %v329, %v329
    %v332 = vpack.c.bf16 %v330, %v330
    %v333 = vld [vmem:[#allocation6] sm:$0xf]
    %v334 = vld [vmem:[#allocation6 + $0x4] sm:$0xf]
    %v335 = vld [vmem:[#allocation6 + $0x8] sm:$0xf]
    %v336 = vld [vmem:[#allocation6 + $0xc] sm:$0xf]
    %v337 = vld [vmem:[#allocation6 + $0x10] sm:$0xf]
    %v338 = vld [vmem:[#allocation6 + $0x14] sm:$0xf]
    %v339 = vld [vmem:[#allocation6 + $0x18] sm:$0xf]
    %v340 = vld [vmem:[#allocation6 + $0x1c] sm:$0xf]
    %v341 = vld [vmem:[#allocation6 + $0x20] sm:$0xf]
    %v342 = vld [vmem:[#allocation6 + $0x24] sm:$0xf]
    %v343 = vld [vmem:[#allocation6 + $0x28] sm:$0xf]
    %v344 = vld [vmem:[#allocation6 + $0x2c] sm:$0xf]
    %v345 = vld [vmem:[#allocation6 + $0x30] sm:$0xf]
    %v346 = vld [vmem:[#allocation6 + $0x34] sm:$0xf]
    %v347 = vld [vmem:[#allocation6 + $0x38] sm:$0xf]
    %v348 = vld [vmem:[#allocation6 + $0x3c] sm:$0xf]
    %v349 = vld [vmem:[#allocation6 + $0x40] sm:$0xf]
    %v350 = vld [vmem:[#allocation6 + $0x44] sm:$0xf]
    %v351 = vld [vmem:[#allocation6 + $0x48] sm:$0xf]
    %v352 = vld [vmem:[#allocation6 + $0x4c] sm:$0xf]
    %v353 = vld [vmem:[#allocation6 + $0x50] sm:$0xf]
    %v354 = vld [vmem:[#allocation6 + $0x54] sm:$0xf]
    %v355 = vld [vmem:[#allocation6 + $0x58] sm:$0xf]
    %v356 = vld [vmem:[#allocation6 + $0x5c] sm:$0xf]
    %v357 = vld [vmem:[#allocation6 + $0x60] sm:$0xf]
    %v358 = vld [vmem:[#allocation6 + $0x64] sm:$0xf]
    %v359 = vld [vmem:[#allocation6 + $0x68] sm:$0xf]
    %v360 = vld [vmem:[#allocation6 + $0x6c] sm:$0xf]
    %v361 = vld [vmem:[#allocation6 + $0x70] sm:$0xf]
    %v362 = vld [vmem:[#allocation6 + $0x74] sm:$0xf]
    %v363 = vld [vmem:[#allocation6 + $0x78] sm:$0xf]
    %v364 = vld [vmem:[#allocation6 + $0x7c] sm:$0xf]
    %v365 = vld [vmem:[%s6] sm:$0x1]
    %v367 = vlaneseq
    %v368 = vshrl.u32 %v367, 7
    %v369 = vsub.s32 0, %v368
    %v370 = vrot.slane %v365, %v369
    %v404 = vunpack.c.l.b16 %v333
    %v405 = vunpack.c.l.b16 %v334
    %v406 = vunpack.c.l.b16 %v335
    %v407 = vunpack.c.l.b16 %v336
    %v408 = vunpack.c.l.b16 %v337
    %v409 = vunpack.c.l.b16 %v338
    %v410 = vunpack.c.l.b16 %v339
    %v411 = vunpack.c.l.b16 %v340
    %v412 = vunpack.c.l.b16 %v341
    %v413 = vunpack.c.l.b16 %v342
    %v414 = vunpack.c.l.b16 %v343
    %v415 = vunpack.c.l.b16 %v344
    %v416 = vunpack.c.l.b16 %v345
    %v417 = vunpack.c.l.b16 %v346
    %v418 = vunpack.c.l.b16 %v347
    %v419 = vunpack.c.l.b16 %v348
    %v420 = vunpack.c.l.b16 %v349
    %v421 = vunpack.c.l.b16 %v350
    %v422 = vunpack.c.l.b16 %v351
    %v423 = vunpack.c.l.b16 %v352
    %v424 = vunpack.c.l.b16 %v353
    %v425 = vunpack.c.l.b16 %v354
    %v426 = vunpack.c.l.b16 %v355
    %v427 = vunpack.c.l.b16 %v356
    %v428 = vunpack.c.l.b16 %v357
    %v429 = vunpack.c.l.b16 %v358
    %v430 = vunpack.c.l.b16 %v359
    %v431 = vunpack.c.l.b16 %v360
    %v432 = vunpack.c.l.b16 %v361
    %v433 = vunpack.c.l.b16 %v362
    %v434 = vunpack.c.l.b16 %v363
    %v435 = vunpack.c.l.b16 %v364
    %v436 = vpack.c.b16 %v405, %v404
    %v437 = vpack.c.b16 %v407, %v406
    %v438 = vpack.c.b16 %v409, %v408
    %v439 = vpack.c.b16 %v411, %v410
    %v440 = vpack.c.b16 %v413, %v412
    %v441 = vpack.c.b16 %v415, %v414
    %v442 = vpack.c.b16 %v417, %v416
    %v443 = vpack.c.b16 %v419, %v418
    %v444 = vpack.c.b16 %v421, %v420
    %v445 = vpack.c.b16 %v423, %v422
    %v446 = vpack.c.b16 %v425, %v424
    %v447 = vpack.c.b16 %v427, %v426
    %v448 = vpack.c.b16 %v429, %v428
    %v449 = vpack.c.b16 %v431, %v430
    %v450 = vpack.c.b16 %v433, %v432
    %v451 = vpack.c.b16 %v435, %v434
    %468 = vmatprep.subr.bf16.mxu0 0
    %469 = vmatpush1.bf16.msra.mxu0 %v436
    %470 = vmatprep.subr.bf16.mxu0 0
    %471 = vmatpush1.bf16.msra.mxu0 %v437
    %472 = vmatprep.subr.bf16.mxu0 0
    %473 = vmatpush1.bf16.msra.mxu0 %v438
    %474 = vmatprep.subr.bf16.mxu0 0
    %475 = vmatpush1.bf16.msra.mxu0 %v439
    %476 = vmatprep.subr.bf16.mxu0 0
    %477 = vmatpush1.bf16.msra.mxu0 %v440
    %478 = vmatprep.subr.bf16.mxu0 0
    %479 = vmatpush1.bf16.msra.mxu0 %v441
    %480 = vmatprep.subr.bf16.mxu0 0
    %481 = vmatpush1.bf16.msra.mxu0 %v442
    %482 = vmatprep.subr.bf16.mxu0 0
    %483 = vmatpush1.bf16.msra.mxu0 %v443
    %484 = vmatprep.subr.bf16.mxu0 0
    %485 = vmatpush1.bf16.msra.mxu0 %v444
    %486 = vmatprep.subr.bf16.mxu0 0
    %487 = vmatpush1.bf16.msra.mxu0 %v445
    %488 = vmatprep.subr.bf16.mxu0 0
    %489 = vmatpush1.bf16.msra.mxu0 %v446
    %490 = vmatprep.subr.bf16.mxu0 0
    %491 = vmatpush1.bf16.msra.mxu0 %v447
    %492 = vmatprep.subr.bf16.mxu0 0
    %493 = vmatpush1.bf16.msra.mxu0 %v448
    %494 = vmatprep.subr.bf16.mxu0 0
    %495 = vmatpush1.bf16.msra.mxu0 %v449
    %496 = vmatprep.subr.bf16.mxu0 0
    %497 = vmatpush1.bf16.msra.mxu0 %v450
    %498 = vmatprep.subr.bf16.mxu0 0
    %499 = vmatpush1.bf16.msra.mxu0 %v451
    %500 = vmatprep.mubr.bf16.mxu0 %v332
    %501 = vmatmul.mubr.bf16.gmra.mrb[0].mxu0 %v331
    %v502 = vpop.f32.mrb[0].mxu0
    %v503 = vadd.f32 %v370, %v502
    %v504 = vpop.f32.mrb[0].mxu0
    %v505 = vpop.f32.mrb[0].mxu0
    %v506 = vpop.f32.mrb[0].mxu0
    %507 = vdwg.mxu0
    %v508 = vld [vmem:[%s7] sm:$0x1]
    %v509 = vld [vmem:[%s8] sm:$0x1]
    %510 = vadd.xlane.f32.xlu0 %v503
    %v511 = vpop.xlane.xlu0 %510
    %v512 = vmul.f32 %v503, %v503
    %513 = vadd.xlane.f32.xlu0 %v512
    %v514 = vpop.xlane.xlu0 %513
    %v515 = vmul.f32 %v511, 0.0078125
    %v516 = vmul.f32 %v514, 0.0078125
    %v517 = vmul.f32 %v515, %v515
    %v518 = vsub.f32 %v516, %v517
    %v519 = vmax.f32 %v518, 0.0
    %v520 = vadd.f32 %v519, 1e-05
    %v521 = vrsqrt.pop %v520
    %v522 = vsub.f32 %v503, %v515
    %v523 = vmul.f32 %v522, %v521
    %v525 = vlaneseq
    %v526 = vshrl.u32 %v525, 7
    %v527 = vsub.s32 0, %v526
    %v528 = vrot.slane %v508, %v527
    %v530 = vmul.f32 %v523, %v528
    %v532 = vlaneseq
    %v533 = vshrl.u32 %v532, 7
    %v534 = vsub.s32 0, %v533
    %v535 = vrot.slane %v509, %v534
    %v537 = vadd.f32 %v530, %v535
    %v538 = vmul.f32 %v537, 0.5
    %v539 = vmul.f32 %v537, 0.70710677
    %v540 = vmax.f32 %v539, -3.832507
    %v541 = vmin.f32 %v540, 3.832507
    %v542 = vmul.f32 %v541, %v541
    %v543 = vmul.f32 %v542, 0.00022905065
    %v544 = vadd.f32 %v543, 0.003408291
    %v545 = vmul.f32 %v544, %v542
    %v546 = vadd.f32 %v545, 0.050955694
    %v547 = vmul.f32 %v546, %v542
    %v548 = vadd.f32 %v547, 0.18520832
    %v549 = vmul.f32 %v548, %v542
    %v550 = vadd.f32 %v549, 1.1283791
    %v551 = vmul.f32 %v542, -1.1791603e-07
    %v552 = vadd.f32 %v551, 2.3547966e-05
    %v553 = vmul.f32 %v552, %v542
    %v554 = vadd.f32 %v553, 0.0010179626
    %v555 = vmul.f32 %v554, %v542
    %v556 = vadd.f32 %v555, 0.01407047
    %v557 = vmul.f32 %v556, %v542
    %v558 = vadd.f32 %v557, 0.11098505
    %v559 = vmul.f32 %v558, %v542
    %v560 = vadd.f32 %v559, 0.49746925
    %v561 = vmul.f32 %v560, %v542
    %v562 = vadd.f32 %v561, 1.0
    %v563 = vmul.f32 %v541, %v550
    %v564 = vrcp.pop %v562
    %v565 = vmul.f32 %v563, %v564
    %v566 = vadd.f32 %v565, 1.0
    %v567 = vmul.f32 %v538, %v566
    %v568 = vpack.c.bf16 %v567, %v567
    %v569 = vld [vmem:[%s9] sm:$0xff]
    %v570 = vld [vmem:[%s9 + $0x8] sm:$0xf]
    %v571 = vld [vmem:[%s9 + $0xc] sm:$0xff]
    %v572 = vld [vmem:[%s9 + $0x14] sm:$0xf]
    %v573 = vld [vmem:[%s9 + $0x18] sm:$0xff]
    %v574 = vld [vmem:[%s9 + $0x20] sm:$0xf]
    %v575 = vld [vmem:[%s9 + $0x24] sm:$0xff]
    %v576 = vld [vmem:[%s9 + $0x2c] sm:$0xf]
    %v577 = vld [vmem:[%s9 + $0x30] sm:$0xff]
    %v578 = vld [vmem:[%s9 + $0x38] sm:$0xf]
    %v579 = vld [vmem:[%s9 + $0x3c] sm:$0xff]
    %v580 = vld [vmem:[%s9 + $0x44] sm:$0xf]
    %v581 = vld [vmem:[%s9 + $0x48] sm:$0xff]
    %v582 = vld [vmem:[%s9 + $0x50] sm:$0xf]
    %v583 = vld [vmem:[%s9 + $0x54] sm:$0xff]
    %v584 = vld [vmem:[%s9 + $0x5c] sm:$0xf]
    %v585 = vld [vmem:[%s9 + $0x60] sm:$0xff]
    %v586 = vld [vmem:[%s9 + $0x68] sm:$0xf]
    %v587 = vld [vmem:[%s9 + $0x6c] sm:$0xff]
    %v588 = vld [vmem:[%s9 + $0x74] sm:$0xf]
    %v589 = vld [vmem:[%s9 + $0x78] sm:$0xff]
    %v590 = vld [vmem:[%s9 + $0x80] sm:$0xf]
    %v591 = vld [vmem:[%s9 + $0x84] sm:$0xff]
    %v592 = vld [vmem:[%s9 + $0x8c] sm:$0xf]
    %v593 = vld [vmem:[%s9 + $0x90] sm:$0xff]
    %v594 = vld [vmem:[%s9 + $0x98] sm:$0xf]
    %v595 = vld [vmem:[%s9 + $0x9c] sm:$0xff]
    %v596 = vld [vmem:[%s9 + $0xa4] sm:$0xf]
    %v597 = vld [vmem:[%s9 + $0xa8] sm:$0xff]
    %v598 = vld [vmem:[%s9 + $0xb0] sm:$0xf]
    %v599 = vld [vmem:[%s9 + $0xb4] sm:$0xff]
    %v600 = vld [vmem:[%s9 + $0xbc] sm:$0xf]
    %v601 = vld [vmem:[%s10] sm:$0x7]
    %v603 = vlaneseq
    %v604 = vshrl.u32 %v603, 7
    %v605 = vsub.s32 0, %v604
    %v606 = vrot.slane %v601, %v605
    %v607 = vlaneseq
    %v608 = vshrl.u32 %v607, 7
    %v609 = vsub.s32 1, %v608
    %v610 = vrot.slane %v601, %v609
    %v611 = vlaneseq
    %v612 = vshrl.u32 %v611, 7
    %v613 = vsub.s32 2, %v612
    %v614 = vrot.slane %v601, %v613
    %v650 = vunpack.c.l.b16 %v569
    %v651 = vunpack.c.h.b16 %v569
    %v652 = vunpack.c.l.b16 %v570
    %v653 = vunpack.c.l.b16 %v571
    %v654 = vunpack.c.h.b16 %v571
    %v655 = vunpack.c.l.b16 %v572
    %v656 = vunpack.c.l.b16 %v573
    %v657 = vunpack.c.h.b16 %v573
    %v658 = vunpack.c.l.b16 %v574
    %v659 = vunpack.c.l.b16 %v575
    %v660 = vunpack.c.h.b16 %v575
    %v661 = vunpack.c.l.b16 %v576
    %v662 = vunpack.c.l.b16 %v577
    %v663 = vunpack.c.h.b16 %v577
    %v664 = vunpack.c.l.b16 %v578
    %v665 = vunpack.c.l.b16 %v579
    %v666 = vunpack.c.h.b16 %v579
    %v667 = vunpack.c.l.b16 %v580
    %v668 = vunpack.c.l.b16 %v581
    %v669 = vunpack.c.h.b16 %v581
    %v670 = vunpack.c.l.b16 %v582
    %v671 = vunpack.c.l.b16 %v583
    %v672 = vunpack.c.h.b16 %v583
    %v673 = vunpack.c.l.b16 %v584
    %v674 = vunpack.c.l.b16 %v585
    %v675 = vunpack.c.h.b16 %v585
    %v676 = vunpack.c.l.b16 %v586
    %v677 = vunpack.c.l.b16 %v587
    %v678 = vunpack.c.h.b16 %v587
    %v679 = vunpack.c.l.b16 %v588
    %v680 = vunpack.c.l.b16 %v589
    %v681 = vunpack.c.h.b16 %v589
    %v682 = vunpack.c.l.b16 %v590
    %v683 = vunpack.c.l.b16 %v591
    %v684 = vunpack.c.h.b16 %v591
    %v685 = vunpack.c.l.b16 %v592
    %v686 = vunpack.c.l.b16 %v593
    %v687 = vunpack.c.h.b16 %v593
    %v688 = vunpack.c.l.b16 %v594
    %v689 = vunpack.c.l.b16 %v595
    %v690 = vunpack.c.h.b16 %v595
    %v691 = vunpack.c.l.b16 %v596
    %v692 = vunpack.c.l.b16 %v597
    %v693 = vunpack.c.h.b16 %v597
    %v694 = vunpack.c.l.b16 %v598
    %v695 = vunpack.c.l.b16 %v599
    %v696 = vunpack.c.h.b16 %v599
    %v697 = vunpack.c.l.b16 %v600
    %v698 = vpack.c.b16 %v653, %v650
    %v699 = vpack.c.b16 %v654, %v651
    %v700 = vpack.c.b16 %v655, %v652
    %v701 = vpack.c.b16 %v659, %v656
    %v702 = vpack.c.b16 %v660, %v657
    %v703 = vpack.c.b16 %v661, %v658
    %v704 = vpack.c.b16 %v665, %v662
    %v705 = vpack.c.b16 %v666, %v663
    %v706 = vpack.c.b16 %v667, %v664
    %v707 = vpack.c.b16 %v671, %v668
    %v708 = vpack.c.b16 %v672, %v669
    %v709 = vpack.c.b16 %v673, %v670
    %v710 = vpack.c.b16 %v677, %v674
    %v711 = vpack.c.b16 %v678, %v675
    %v712 = vpack.c.b16 %v679, %v676
    %v713 = vpack.c.b16 %v683, %v680
    %v714 = vpack.c.b16 %v684, %v681
    %v715 = vpack.c.b16 %v685, %v682
    %v716 = vpack.c.b16 %v689, %v686
    %v717 = vpack.c.b16 %v690, %v687
    %v718 = vpack.c.b16 %v691, %v688
    %v719 = vpack.c.b16 %v695, %v692
    %v720 = vpack.c.b16 %v696, %v693
    %v721 = vpack.c.b16 %v697, %v694
    %746 = vmatprep.subr.bf16.mxu0 %v699
    %747 = vmatpush1.bf16.msra.mxu0 %v698
    %748 = vmatprep.subr.bf16.mxu0 %v702
    %749 = vmatpush1.bf16.msra.mxu0 %v701
    %750 = vmatprep.subr.bf16.mxu0 %v705
    %751 = vmatpush1.bf16.msra.mxu0 %v704
    %752 = vmatprep.subr.bf16.mxu0 %v708
    %753 = vmatpush1.bf16.msra.mxu0 %v707
    %754 = vmatprep.subr.bf16.mxu0 %v711
    %755 = vmatpush1.bf16.msra.mxu0 %v710
    %756 = vmatprep.subr.bf16.mxu0 %v714
    %757 = vmatpush1.bf16.msra.mxu0 %v713
    %758 = vmatprep.subr.bf16.mxu0 %v717
    %759 = vmatpush1.bf16.msra.mxu0 %v716
    %760 = vmatprep.subr.bf16.mxu0 %v720
    %761 = vmatpush1.bf16.msra.mxu0 %v719
    %762 = vmatprep.subr.bf16.mxu0 0
    %763 = vmatpush1.bf16.msra.mxu0 0
    %764 = vmatprep.subr.bf16.mxu0 0
    %765 = vmatpush1.bf16.msra.mxu0 0
    %766 = vmatprep.subr.bf16.mxu0 0
    %767 = vmatpush1.bf16.msra.mxu0 0
    %768 = vmatprep.subr.bf16.mxu0 0
    %769 = vmatpush1.bf16.msra.mxu0 0
    %770 = vmatprep.subr.bf16.mxu0 0
    %771 = vmatpush1.bf16.msra.mxu0 0
    %772 = vmatprep.subr.bf16.mxu0 0
    %773 = vmatpush1.bf16.msra.mxu0 0
    %774 = vmatprep.subr.bf16.mxu0 0
    %775 = vmatpush1.bf16.msra.mxu0 0
    %776 = vmatprep.subr.bf16.mxu0 0
    %777 = vmatpush1.bf16.msra.mxu0 0
    %778 = vmatprep.mubr.bf16.mxu0 0
    %779 = vmatmul.mubr.bf16.gmra.mrb[0].mxu0 %v568
    %v780 = vpop.f32.mrb[0].mxu0
    %v781 = vadd.f32 %v606, %v780
    %v782 = vpop.f32.mrb[0].mxu0
    %v783 = vadd.f32 %v610, %v782
    %v784 = vpop.f32.mrb[0].mxu0
    %v785 = vpop.f32.mrb[0].mxu0
    %786 = vdwg.mxu0
    %787 = vmatprep.subr.bf16.mxu0 0
    %788 = vmatpush1.bf16.msra.mxu0 %v700
    %789 = vmatprep.subr.bf16.mxu0 0
    %790 = vmatpush1.bf16.msra.mxu0 %v703
    %791 = vmatprep.subr.bf16.mxu0 0
    %792 = vmatpush1.bf16.msra.mxu0 %v706
    %793 = vmatprep.subr.bf16.mxu0 0
    %794 = vmatpush1.bf16.msra.mxu0 %v709
    %795 = vmatprep.subr.bf16.mxu0 0
    %796 = vmatpush1.bf16.msra.mxu0 %v712
    %797 = vmatprep.subr.bf16.mxu0 0
    %798 = vmatpush1.bf16.msra.mxu0 %v715
    %799 = vmatprep.subr.bf16.mxu0 0
    %800 = vmatpush1.bf16.msra.mxu0 %v718
    %801 = vmatprep.subr.bf16.mxu0 0
    %802 = vmatpush1.bf16.msra.mxu0 %v721
    %803 = vmatprep.subr.bf16.mxu0 0
    %804 = vmatpush1.bf16.msra.mxu0 0
    %805 = vmatprep.subr.bf16.mxu0 0
    %806 = vmatpush1.bf16.msra.mxu0 0
    %807 = vmatprep.subr.bf16.mxu0 0
    %808 = vmatpush1.bf16.msra.mxu0 0
    %809 = vmatprep.subr.bf16.mxu0 0
    %810 = vmatpush1.bf16.msra.mxu0 0
    %811 = vmatprep.subr.bf16.mxu0 0
    %812 = vmatpush1.bf16.msra.mxu0 0
    %813 = vmatprep.subr.bf16.mxu0 0
    %814 = vmatpush1.bf16.msra.mxu0 0
    %815 = vmatprep.subr.bf16.mxu0 0
    %816 = vmatpush1.bf16.msra.mxu0 0
    %817 = vmatprep.subr.bf16.mxu0 0
    %818 = vmatpush1.bf16.msra.mxu0 0
    %819 = vmatprep.mubr.bf16.mxu0 0
    %820 = vmatmul.mubr.bf16.gmra.mrb[0].mxu0 %v568
    %v821 = vpop.f32.mrb[0].mxu0
    %v822 = vadd.f32 %v614, %v821
    %v823 = vpop.f32.mrb[0].mxu0
    %v824 = vpop.f32.mrb[0].mxu0
    %v825 = vpop.f32.mrb[0].mxu0
    %826 = vdwg.mxu0
    %v827 = vmul.f32 %v781, %v781
    %v828 = vmul.f32 %v783, %v783
    %v829 = vmul.f32 %v822, %v822
    %v830 = vadd.f32 %v827, %v828
    %v831 = vadd.f32 %v830, %v829
    %832 = vadd.xlane.f32.xlu0 %v831
    %v833 = vpop.xlane.xlu0 %832
    %v834 = vmax.f32 %v833, 1e-24
    %v835 = vrsqrt.pop %v834
    %v836 = vmul.f32 %v781, %v835
    %v837 = vmul.f32 %v783, %v835
    %v838 = vmul.f32 %v822, %v835
    %839 = vst [vmem:[#allocation8] sm:$0xff] %v836
    %840 = vst [vmem:[#allocation8 + $0x8] sm:$0xff] %v837
    %841 = vst [vmem:[#allocation8 + $0x10] sm:$0xff] %v838
    // Predicated region
    $region54: #{student_tower_forward.1} parent=1 // pred_check
      _
    $region55: #{student_tower_forward.1} parent=1 // pred_check_branch
      %843 = sbr.rel (0) target = $region57
    $region56: #{student_tower_forward.1} parent=1 // pred_region
      %s845 = ssub.s32 384, 384
      %846 = vsyncadd [#allocation5], %s845
      %s848 = sshll.u32 [#allocation8], 4
      %s849 = int_to_ptr.vmem [resolvable:$true] %s848
      %851 = dma.vmem_to_hbm [thread:$0]  %s849, 384, %s11, [#allocation5]
    $region57: #{student_tower_forward.1} parent=1 // pred_fallthru
      _
    // Predicated region
    $region58: #{student_tower_forward.1} parent=1 // pred_check
      _
    $region59: #{student_tower_forward.1} parent=1 // pred_check_branch
      %853 = sbr.rel (0) target = $region61
    $region60: #{student_tower_forward.1} parent=1 // pred_region
      %854 = dma.done [#allocation5], 384
    $region61: #{student_tower_forward.1} parent=1 // pred_fallthru
      _
    %855 = vsyncpa [#allocation4], 1
    %856 = vsyncpa [#allocation7], 1
    %857 = vsyncpa [#allocation5], 1

</llo_original>
